<compile_context>
chip_gen: v6e
topology: v6e:2x2x1
jax: 0.10.0
libtpu: 0.0.40
codegen_flags: <defaults>
</compile_context>

<pallas_src>
import jax
import jax.numpy as jnp
from jax.experimental import pallas as pl
from jax.experimental.pallas import tpu as pltpu


def _ste_kernel(x_ref, o_ref):
    x = x_ref[...]                                   # (tm, D) tile in VMEM
    tm, D = x.shape
    # Row-wise max over the feature axis (dim=1).  Exact float equality against
    # row_max is correct (row_max is a bit-exact element of the row, no arithmetic).
    row_max = jnp.max(x, axis=1, keepdims=True)      # (tm, 1)
    col_idx = jax.lax.broadcasted_iota(jnp.int32, (tm, D), 1)
    masked_idx = jnp.where(x == row_max, col_idx, jnp.int32(D))
    # First index achieving the max (matches torch.max first-occurrence + scatter_:
    # exactly ONE element per row is set to 1, even on ties).
    first_idx = jnp.min(masked_idx, axis=1, keepdims=True)   # (tm, 1)
    # Build the one-hot from masked_idx so col_idx is dead before the reduce:
    # one fewer live (tm, D) int32 value and one fewer VPU compare pass.
    o_ref[...] = (masked_idx == first_idx).astype(o_ref.dtype)


def _round_up(x: int, m: int) -> int:
    return ((x + m - 1) // m) * m


def _chip_profile():
    """(budget_per_block_bytes, vmem_limit_bytes, two_tensorcores)."""
    try:
        vmem = int(pltpu.get_tpu_info().vmem_capacity_bytes)
    except Exception:
        vmem = 128 << 20  # assume v5e/v6e-class if the query is unavailable
    if vmem < (100 << 20):
        # v7x-class: 64 MiB VMEM per TC, 2 TensorCores per chip.
        return 3 << 20, 48 << 20, True
    # v5e/v6e-class: 128 MiB VMEM, single TensorCore.
    return 6 << 20, 64 << 20, False


def _choose_tm(n_rows: int, d: int, itemsize: int,
               budget_per_block: int, two_cores: bool) -> int:
    """Pick a row tile: big enough to hit HBM roofline, small enough for VMEM."""
    min_sub = max(8, 32 // itemsize)     # dtype-aware sublane packing: f32 8, bf16 16, i8 32
    rows_fit = budget_per_block // max(1, d * itemsize)
    if rows_fit >= 32:
        tm = (rows_fit // 32) * 32       # multiple of 32: sublane-full for all dtypes
    else:
        # TODO(synk): vocab-sized D should switch to a two-pass (argmax then one-hot
        # scatter) kernel instead of shrinking the row tile below a sublane group.
        tm = max(min_sub, (rows_fit // min_sub) * min_sub)
    # Never bigger than the batch (rounded up to a sublane group).
    tm = min(tm, _round_up(n_rows, 32))
    if two_cores and n_rows * d * itemsize >= (8 << 20):
        # Dual-TC chips: cap tm so the grid has >= 8 steps (>= 4 per core) for
        # DMA/compute overlap on both cores; each block stays >= ~1 MiB.
        tm = min(tm, max(32, _round_up(pl.cdiv(n_rows, 8), 32)))
    return max(tm, min_sub)


def ste_forward(x: jax.Array, *, tm: int | None = None) -> jax.Array:
    """One-hot-of-argmax along axis 1, shape/dtype preserved (STE forward)."""
    assert x.ndim == 2, "STE kernel expects [N, D]"
    N, D = x.shape
    itemsize = x.dtype.itemsize
    budget, vmem_limit, two_cores = _chip_profile()
    if tm is None:
        tm = _choose_tm(N, D, itemsize, budget, two_cores)

    # Ragged last block is handled by Pallas (masked writes); no pad/slice copies.
    grid = pl.cdiv(N, tm)

    return pl.pallas_call(
        _ste_kernel,
        out_shape=jax.ShapeDtypeStruct((N, D), x.dtype),
        grid_spec=pltpu.PrefetchScalarGridSpec(
            num_scalar_prefetch=0,
            grid=(grid,),
            in_specs=[pl.BlockSpec((tm, D), lambda i: (i, 0))],
            out_specs=pl.BlockSpec((tm, D), lambda i: (i, 0)),
        ),
        compiler_params=pltpu.CompilerParams(
            dimension_semantics=("parallel",),
            vmem_limit_bytes=vmem_limit,
        ),
        cost_estimate=pl.CostEstimate(
            flops=3 * N * D,                       # compares / selects per element
            transcendentals=0,
            bytes_accessed=2 * N * D * itemsize,   # bandwidth-bound: read + write
        ),
    )(x)


def _reference(x: jax.Array) -> jax.Array:
    idx = jnp.argmax(x, axis=1)
    return jax.nn.one_hot(idx, x.shape[1], dtype=x.dtype)


if __name__ == "__main__":
    key = jax.random.PRNGKey(0)

    # Small, lane-aligned case with ties (exercises "first max index" rule).
    N, D = 16, 128
    x = jax.random.normal(key, (N, D), dtype=jnp.float32)
    x = x.at[0, 5].set(10.0).at[0, 7].set(10.0)
    out = jax.block_until_ready(ste_forward(x))
    ref = _reference(x)
    assert out.shape == x.shape and out.dtype == x.dtype
    assert jnp.array_equal(out, ref), "mismatch vs reference (16x128)"
    assert jnp.all(out.sum(axis=1) == 1.0), "each row must be one-hot (16x128)"

    # Odd batch / non-128 feature dim: exercises the ragged (masked-write) block
    # path and a block whose feature extent equals the full array dim.
    x2 = jax.random.normal(jax.random.PRNGKey(1), (10, 96), dtype=jnp.float32)
    out2 = jax.block_until_ready(ste_forward(x2))
    ref2 = _reference(x2)
    assert out2.shape == x2.shape and out2.dtype == x2.dtype
    assert jnp.array_equal(out2, ref2), "mismatch vs reference (10x96)"
    assert jnp.all(out2.sum(axis=1) == 1.0), "each row must be one-hot (10x96)"

    # Multi-step grid with a ragged last block (explicit tile override).
    x3 = jax.random.normal(jax.random.PRNGKey(2), (300, 256), dtype=jnp.float32)
    out3 = jax.block_until_ready(ste_forward(x3, tm=64))
    ref3 = _reference(x3)
    assert out3.shape == x3.shape and out3.dtype == x3.dtype
    assert jnp.array_equal(out3, ref3), "mismatch vs reference (300x256)"
    assert jnp.all(out3.sum(axis=1) == 1.0), "each row must be one-hot (300x256)"

    print("KERNEL_OK")
</pallas_src>

<mosaic_0001>
module attributes {stable_mosaic.version = 11 : i64} {
  func.func @_ste_kernel(%arg0: i32, %arg1: memref<32x128xf32, #tpu.memory_space<vmem>>, %arg2: memref<32x128xf32, #tpu.memory_space<vmem>>) attributes {dimension_semantics = [#tpu.dimension_semantics<parallel>], iteration_bounds = array<i64: 1>, scalar_prefetch = 0 : i64, scratch_operands = 0 : i64, tpu.core_type = #tpu.core_type<tc>, window_params = [{transform_indices = @transform_0, window_bounds = array<i64: 32, 128>}, {transform_indices = @transform_1, window_bounds = array<i64: 32, 128>}]} {
    %c0 = arith.constant 0 : index
    %c0_0 = arith.constant 0 : index
    %0 = vector.load %arg1[%c0, %c0_0] : memref<32x128xf32, #tpu.memory_space<vmem>>, vector<32x128xf32>
    %cst = arith.constant dense<0xFF800000> : vector<32xf32>
    %1 = vector.multi_reduction <maximumf>, %0, %cst [1] : vector<32x128xf32> to vector<32xf32>
    %2 = vector.shape_cast %1 : vector<32xf32> to vector<32x1xf32>
    %3 = tpu.iota {dimensions = array<i32: 1>} : vector<32x128xi32>
    %4 = vector.broadcast %2 : vector<32x1xf32> to vector<32x128xf32>
    %5 = arith.cmpf oeq, %0, %4 : vector<32x128xf32>
    %c128_i32 = arith.constant 128 : i32
    %6 = vector.broadcast %c128_i32 : i32 to vector<32x128xi32>
    %7 = arith.select %5, %3, %6 : vector<32x128xi1>, vector<32x128xi32>
    %cst_1 = arith.constant dense<2147483647> : vector<32xi32>
    %8 = vector.multi_reduction <minsi>, %7, %cst_1 [1] : vector<32x128xi32> to vector<32xi32>
    %9 = vector.shape_cast %8 : vector<32xi32> to vector<32x1xi32>
    %10 = vector.broadcast %9 : vector<32x1xi32> to vector<32x128xi32>
    %11 = arith.cmpi eq, %7, %10 : vector<32x128xi32>
    %12 = arith.extui %11 : vector<32x128xi1> to vector<32x128xi32>
    %13 = arith.sitofp %12 : vector<32x128xi32> to vector<32x128xf32>
    %c0_2 = arith.constant 0 : index
    %c0_3 = arith.constant 0 : index
    %14 = vector.load %arg2[%c0_2, %c0_3] : memref<32x128xf32, #tpu.memory_space<vmem>>, vector<32x128xf32>
    tpu.vector_store %arg2[%c0_2, %c0_3], %13 {strides = array<i32>} : memref<32x128xf32, #tpu.memory_space<vmem>>, vector<32x128xf32>,
    return
  }
  func.func @transform_0(%arg0: i32) -> (i32, i32) {
    %c0_i32 = arith.constant 0 : i32
    %c0_i32_0 = arith.constant 0 : i32
    return %arg0, %c0_i32 : i32, i32
  }
  func.func @transform_1(%arg0: i32) -> (i32, i32) {
    %c0_i32 = arith.constant 0 : i32
    %c0_i32_0 = arith.constant 0 : i32
    return %arg0, %c0_i32 : i32, i32
  }
}

</mosaic_0001>

<llo_original>
// kernel: tpu_custom_call.1
$region0: #{tpu_custom_call.1}
  #allocation0 [shape = 'u32[]', space=smem, size = 0x4, offset = 0x4, fixed_abs, tag = 'smem constant byte address 0x4 - core index']
  #allocation1 [shape = 'u32[144,128]{1,0:T(1,128)}', space=vmem, size = 0x12000, scoped, tag = 'internal scratch']
  %s0 = inlined_call_operand.hbm [shape: f32[16,128], index: 0, kind: input, shape index: {}]
  %s1 = inlined_call_operand.hbm [shape: f32[16,128], index: 1, kind: output, shape index: {}]
  %s2 = sld [smem:[#allocation0]]
  $region18: #{tpu_custom_call.1} parent=0
    _
  %s4 = ssub.s32 1, %s2
  %s5 = scalar_select 0, %s4, %s2
  $region1: #{tpu_custom_call.1} parent=0
    #allocation2 [shape = 'u8[16384]{0}', space=vmem, size = 0x4000, scoped, tag = 'input window, operand 0, single buffered']
    #allocation3 [shape = 's32[1]{0}', space=sflag, size = 0x4, scoped, tag = 'scoped memory for tpu_custom_call.1']
    #allocation4 [shape = 's32[1]{0}', space=sflag, size = 0x4, scoped, tag = 'scoped memory for tpu_custom_call.1']
    #allocation5 [shape = 'u8[16384]{0}', space=vmem, size = 0x4000, scoped, tag = 'output window, operand 0, single buffered']
    %6 = vsyncpa [#allocation3], 0
    %7 = vsyncpa [#allocation4], 0
    // Predicated region
    $region2: #{tpu_custom_call.1} parent=1 // pred_check
      _
    $region3: #{tpu_custom_call.1} parent=1 // pred_check_branch
      %9 = sbr.rel (0) target = $region5
    $region4: #{tpu_custom_call.1} parent=1 // pred_region
      %s11 = ssub.s32 512, 256
      %12 = vsyncadd [#allocation3], %s11
      %s13 = sshll.u32 [#allocation2], 4
      %s14 = int_to_ptr.vmem [resolvable:$true] %s13
      %19 = dma.hbm_to_vmem [thread:$0]  %s0, 256, %s14, [#allocation3], 128, 128, 8
    $region5: #{tpu_custom_call.1} parent=1 // pred_fallthru
      _
    // Predicated region
    $region6: #{tpu_custom_call.1} parent=1 // pred_check
      _
    $region7: #{tpu_custom_call.1} parent=1 // pred_check_branch
      %21 = sbr.rel (0) target = $region9
    $region8: #{tpu_custom_call.1} parent=1 // pred_region
      %22 = dma.done [#allocation3], 512
    $region9: #{tpu_custom_call.1} parent=1 // pred_fallthru
      _
    %v23 = vld [vmem:[#allocation2] sm:$0xff]
    %v24 = vld [vmem:[#allocation2 + $0x8] sm:$0xff]
    %v25 = vld [vmem:[#allocation2 + $0x10] sm:$0xff]
    %v26 = vld [vmem:[#allocation2 + $0x18] sm:$0xff]
    %27 = vmax.xlane.f32.xlu0 %v23
    %v28 = vpop.xlane.xlu0 %27
    %29 = vmax.xlane.f32.xlu0 %v24
    %v30 = vpop.xlane.xlu0 %29
    %31 = vmax.xlane.f32.xlu0 %v25
    %v32 = vpop.xlane.xlu0 %31
    %33 = vmax.xlane.f32.xlu0 %v26
    %v34 = vpop.xlane.xlu0 %33
    %v35 = vlaneseq
    %v36 = vand.u32 %v35, 127
    %vm37 = vcmp.eq.f32.partialorder %v23, %v28
    %vm38 = vcmp.eq.f32.partialorder %v24, %v30
    %vm39 = vcmp.eq.f32.partialorder %v25, %v32
    %vm40 = vcmp.eq.f32.partialorder %v26, %v34
    %v41 = vsel %vm37, %v36, 128
    %v42 = vsel %vm38, %v36, 128
    %v43 = vsel %vm39, %v36, 128
    %v44 = vsel %vm40, %v36, 128
    %v45 = vand.u32 %v41, 65535
    %v46 = vshra.s32 %v41, 16
    %v47 = vcvt.s32.f32 %v45
    %v48 = vcvt.s32.f32 %v46
    %49 = vmin.xlane.f32.xlu0 %v48
    %v50 = vpop.xlane.xlu0 %49
    %vm51 = vcmp.eq.f32.partialorder %v48, %v50
    %v52 = vsel %vm51, %v47, inf
    %53 = vmin.xlane.f32.xlu0 %v52
    %v54 = vpop.xlane.xlu0 %53
    %v55 = vcvt.f32.s32 %v54
    %v56 = vcvt.f32.s32 %v50
    %v57 = vshll.u32 %v56, 16
    %v58 = vadd.s32 %v57, %v55
    %v59 = vand.u32 %v42, 65535
    %v60 = vshra.s32 %v42, 16
    %v61 = vcvt.s32.f32 %v59
    %v62 = vcvt.s32.f32 %v60
    %63 = vmin.xlane.f32.xlu0 %v62
    %v64 = vpop.xlane.xlu0 %63
    %vm65 = vcmp.eq.f32.partialorder %v62, %v64
    %v66 = vsel %vm65, %v61, inf
    %67 = vmin.xlane.f32.xlu0 %v66
    %v68 = vpop.xlane.xlu0 %67
    %v69 = vcvt.f32.s32 %v68
    %v70 = vcvt.f32.s32 %v64
    %v71 = vshll.u32 %v70, 16
    %v72 = vadd.s32 %v71, %v69
    %v73 = vand.u32 %v43, 65535
    %v74 = vshra.s32 %v43, 16
    %v75 = vcvt.s32.f32 %v73
    %v76 = vcvt.s32.f32 %v74
    %77 = vmin.xlane.f32.xlu0 %v76
    %v78 = vpop.xlane.xlu0 %77
    %vm79 = vcmp.eq.f32.partialorder %v76, %v78
    %v80 = vsel %vm79, %v75, inf
    %81 = vmin.xlane.f32.xlu0 %v80
    %v82 = vpop.xlane.xlu0 %81
    %v83 = vcvt.f32.s32 %v82
    %v84 = vcvt.f32.s32 %v78
    %v85 = vshll.u32 %v84, 16
    %v86 = vadd.s32 %v85, %v83
    %v87 = vand.u32 %v44, 65535
    %v88 = vshra.s32 %v44, 16
    %v89 = vcvt.s32.f32 %v87
    %v90 = vcvt.s32.f32 %v88
    %91 = vmin.xlane.f32.xlu0 %v90
    %v92 = vpop.xlane.xlu0 %91
    %vm93 = vcmp.eq.f32.partialorder %v90, %v92
    %v94 = vsel %vm93, %v89, inf
    %95 = vmin.xlane.f32.xlu0 %v94
    %v96 = vpop.xlane.xlu0 %95
    %v97 = vcvt.f32.s32 %v96
    %v98 = vcvt.f32.s32 %v92
    %v99 = vshll.u32 %v98, 16
    %v100 = vadd.s32 %v99, %v97
    %vm101 = vcmp.eq.s32.totalorder %v41, %v58
    %vm102 = vcmp.eq.s32.totalorder %v42, %v72
    %vm103 = vcmp.eq.s32.totalorder %v43, %v86
    %vm104 = vcmp.eq.s32.totalorder %v44, %v100
    %v105 = vsel %vm101, 1, 0
    %v106 = vsel %vm102, 1, 0
    %v107 = vsel %vm103, 1, 0
    %v108 = vsel %vm104, 1, 0
    %v109 = vcvt.s32.f32 %v105
    %v110 = vcvt.s32.f32 %v106
    %v111 = vcvt.s32.f32 %v107
    %v112 = vcvt.s32.f32 %v108
    %113 = vst [vmem:[#allocation5] sm:$0xff] %v109
    %114 = vst [vmem:[#allocation5 + $0x8] sm:$0xff] %v110
    %115 = vst [vmem:[#allocation5 + $0x10] sm:$0xff] %v111
    %116 = vst [vmem:[#allocation5 + $0x18] sm:$0xff] %v112
    // Predicated region
    $region10: #{tpu_custom_call.1} parent=1 // pred_check
      _
    $region11: #{tpu_custom_call.1} parent=1 // pred_check_branch
      %118 = sbr.rel (0) target = $region13
    $region12: #{tpu_custom_call.1} parent=1 // pred_region
      %s120 = ssub.s32 512, 256
      %121 = vsyncadd [#allocation4], %s120
      %s122 = sshll.u32 [#allocation5], 4
      %s123 = int_to_ptr.vmem [resolvable:$true] %s122
      %128 = dma.vmem_to_hbm [thread:$0]  %s123, 256, %s1, [#allocation4], 128, 128, 8
    $region13: #{tpu_custom_call.1} parent=1 // pred_fallthru
      _
    // Predicated region
    $region14: #{tpu_custom_call.1} parent=1 // pred_check
      _
    $region15: #{tpu_custom_call.1} parent=1 // pred_check_branch
      %130 = sbr.rel (0) target = $region17
    $region16: #{tpu_custom_call.1} parent=1 // pred_region
      %131 = dma.done [#allocation4], 512
    $region17: #{tpu_custom_call.1} parent=1 // pred_fallthru
      _
    %132 = vsyncpa [#allocation3], 1
    %133 = vsyncpa [#allocation4], 1

</llo_original>
